<compile_context>
chip_gen: v7x
topology: tpu7x:2x2x1
jax: 0.10.0
libtpu: 0.0.40
codegen_flags: <defaults>
</compile_context>

<pallas_src>
import functools

import jax
import jax.numpy as jnp
from jax.experimental import pallas as pl
from jax.experimental.pallas import tpu as pltpu


def _round_up(x: int, m: int) -> int:
    return ((x + m - 1) // m) * m


def _vmem_budget_bytes() -> int:
    """Generation-aware VMEM budget with 25% headroom for compiler scratch."""
    cap = 64 << 20  # safe default (v7x physical VMEM)
    try:
        info = pltpu.get_tpu_info()
        cap = int(getattr(info, "vmem_capacity_bytes", cap))
    except Exception:
        pass
    return max(16 << 20, (cap * 3) // 4)


def _sape_contrib(y_true_ref, y_pred_ref, mask_ref):
    """Masked SAPE contribution of the current tile (torch-exact NaN/inf handling)."""
    yt = y_true_ref[...].astype(jnp.float32)
    yp = y_pred_ref[...].astype(jnp.float32)
    m = mask_ref[...].astype(jnp.float32)

    ae = jnp.abs(yt - yp)
    denom = jnp.abs(yt) + jnp.abs(yp)
    raw = ae / denom  # 0/0 -> NaN, x/0 -> inf (both fail the < inf test below)
    sape = jnp.where(raw < jnp.float32(jnp.inf), raw, jnp.float32(0.0))
    return sape * m


def _smape_single_kernel(y_true_ref, y_pred_ref, mask_ref, out_ref, *, scale):
    # Whole problem in one block: no accumulator, no pl.when phases.
    contrib = _sape_contrib(y_true_ref, y_pred_ref, mask_ref)
    out_ref[0, 0] = jnp.sum(contrib) * jnp.float32(scale)


def _smape_tiled_kernel(y_true_ref, y_pred_ref, mask_ref, out_ref, *,
                        rows_total, tile_rows, width, tiles_per_part,
                        needs_row_mask):
    i = pl.program_id(1)

    # The (8, width) output block is resident across the reduction axis — it IS the
    # accumulator (no full-tile VMEM scratch).
    @pl.when(i == 0)
    def _():
        out_ref[...] = jnp.zeros_like(out_ref)

    contrib = _sape_contrib(y_true_ref, y_pred_ref, mask_ref)

    if needs_row_mask:
        # Tail tile: zero rows past the real extent (jnp.where -> NaN-safe select).
        p = pl.program_id(0)
        row_ids = jax.lax.broadcasted_iota(jnp.int32, contrib.shape, 0)
        global_rows = row_ids + (p * tiles_per_part + i) * tile_rows
        contrib = jnp.where(global_rows < rows_total, contrib, jnp.float32(0.0))

    # Fold the tile's rows into sublane groups of 8 (vreg-aligned reshape) and
    # accumulate — pure VPU adds, no full-tile read-modify-write.
    out_ref[...] += contrib.reshape(tile_rows // 8, 8, width).sum(axis=0)


def _canonicalize(y_true, y_pred, mask):
    """Return a lane-dense 2-D view (rows, width) of the three inputs."""
    B, H = y_true.shape
    if H % 128 == 0:
        return y_true, y_pred, mask, B, H
    total = B * H
    pad = (-total) % 128

    def flat(x):
        x = x.reshape(-1)
        if pad:
            x = jnp.pad(x, (0, pad))  # zero pads -> mask=0 -> zero contribution
        return x.reshape(-1, 128)

    rows = (total + pad) // 128
    return flat(y_true), flat(y_pred), flat(mask), rows, 128


def nbeats_smape(y_true: jax.Array, y_pred: jax.Array, mask: jax.Array,
                 *, tile_rows: int | None = None) -> jax.Array:
    """SMAPE with mask, equivalent to the torch NBeatsSMAPE.forward."""
    assert y_true.shape == y_pred.shape == mask.shape
    assert y_true.ndim == 2, "expected (batch, horizon) layout"
    B, H = y_true.shape
    scale = 200.0 / float(B * H)

    yt2, yp2, m2, rows_total, width = _canonicalize(y_true, y_pred, mask)

    in_itemsizes = (jnp.dtype(y_true.dtype).itemsize
                    + jnp.dtype(y_pred.dtype).itemsize
                    + jnp.dtype(mask.dtype).itemsize)

    # Sublane packing: 8 rows/vreg for 4-byte dtypes, 16 for 2-byte, 32 for 1-byte.
    row_align = 8
    for x in (y_true, y_pred, mask):
        row_align = max(row_align, 32 // max(1, jnp.dtype(x.dtype).itemsize))

    budget = _vmem_budget_bytes()

    if tile_rows is None:
        # Per-row VMEM model: double-buffered native-dtype inputs (x3) plus ~6 live
        # full-tile f32 temporaries inside the kernel body.
        per_row = width * (2 * in_itemsizes + 6 * 4)
        tile_rows = max(row_align, (budget // per_row) // row_align * row_align)
    else:
        tile_rows = max(row_align, _round_up(tile_rows, row_align))

    bytes_accessed = int(yt2.size * yt2.dtype.itemsize
                         + yp2.size * yp2.dtype.itemsize
                         + m2.size * m2.dtype.itemsize + 4)
    cost = pl.CostEstimate(flops=10 * rows_total * width, transcendentals=0,
                           bytes_accessed=bytes_accessed)

    # ---- Single-block fast path (the actual NBeats metric shapes) ---------------
    if rows_total <= tile_rows:
        kernel = functools.partial(_smape_single_kernel, scale=scale)
        out = pl.pallas_call(
            kernel,
            out_shape=jax.ShapeDtypeStruct((1, 1), jnp.float32),
            grid_spec=pltpu.PrefetchScalarGridSpec(
                num_scalar_prefetch=0,
                grid=(1,),
                in_specs=[pl.BlockSpec((rows_total, width), lambda i: (0, 0))] * 3,
                out_specs=pl.BlockSpec((1, 1), lambda i: (0, 0),
                                       memory_space=pltpu.SMEM),
            ),
            compiler_params=pltpu.CompilerParams(
                dimension_semantics=("arbitrary",),
                vmem_limit_bytes=int(budget)),
            cost_estimate=cost,
        )(yt2, yp2, m2)
        return out[0, 0]

    # ---- General streaming path --------------------------------------------------
    n_tiles = pl.cdiv(rows_total, tile_rows)
    # 2-way partial split (uses both v7x TensorCores for the HBM stream); only when
    # it splits evenly so no fully out-of-range blocks are ever addressed.
    if n_tiles >= 8 and n_tiles % 2 == 0:
        n_par, tiles_per_part = 2, n_tiles // 2
    else:
        n_par, tiles_per_part = 1, n_tiles

    needs_row_mask = (rows_total % tile_rows) != 0

    kernel = functools.partial(
        _smape_tiled_kernel, rows_total=rows_total, tile_rows=tile_rows,
        width=width, tiles_per_part=tiles_per_part, needs_row_mask=needs_row_mask)

    in_spec = pl.BlockSpec((tile_rows, width),
                           lambda p, i: (p * tiles_per_part + i, 0))

    out = pl.pallas_call(
        kernel,
        out_shape=jax.ShapeDtypeStruct((n_par, 8, width), jnp.float32),
        grid_spec=pltpu.PrefetchScalarGridSpec(
            num_scalar_prefetch=0,
            grid=(n_par, tiles_per_part),
            in_specs=[in_spec, in_spec, in_spec],
            out_specs=pl.BlockSpec((None, 8, width), lambda p, i: (p, 0, 0)),
        ),
        compiler_params=pltpu.CompilerParams(
            dimension_semantics=("parallel", "arbitrary"),
            vmem_limit_bytes=int(budget)),
        cost_estimate=cost,
    )(yt2, yp2, m2)

    # Tiny final reduce of the per-partition (8, width) partials + scaling.
    return jnp.sum(out) * jnp.float32(scale)


def _reference_smape(y_true, y_pred, mask):
    ae = jnp.abs(y_true - y_pred)
    sape = ae / (jnp.abs(y_true) + jnp.abs(y_pred))
    sape = jnp.where(jnp.isnan(sape) | jnp.isinf(sape), 0.0, sape)
    return 200.0 * jnp.mean(sape * mask)


if __name__ == "__main__":
    key = jax.random.PRNGKey(0)
    k1, k2, k3 = jax.random.split(key, 3)

    # Primary NBeats-metric shape (batch, horizon) -> single-block fast path.
    B, H = 16, 128
    y_true = jax.random.normal(k1, (B, H), dtype=jnp.float32)
    y_pred = jax.random.normal(k2, (B, H), dtype=jnp.float32)
    mask = (jax.random.uniform(k3, (B, H)) > 0.3).astype(jnp.float32)
    # Exercise the 0/0 -> NaN -> 0 replacement path of the torch module.
    y_true = y_true.at[0, :8].set(0.0)
    y_pred = y_pred.at[0, :8].set(0.0)

    res = nbeats_smape(y_true, y_pred, mask)
    jax.block_until_ready(res)
    ref = _reference_smape(y_true, y_pred, mask)
    assert jnp.allclose(res, ref, rtol=1e-5, atol=1e-6), (res, ref)

    # Lane-dense flatten + zero-pad path (H not a multiple of 128).
    B2, H2 = 3, 50
    yt2 = jax.random.normal(jax.random.PRNGKey(1), (B2, H2), dtype=jnp.float32)
    yp2 = jax.random.normal(jax.random.PRNGKey(2), (B2, H2), dtype=jnp.float32)
    m2 = (jax.random.uniform(jax.random.PRNGKey(3), (B2, H2)) > 0.5).astype(jnp.float32)
    res2 = nbeats_smape(yt2, yp2, m2)
    jax.block_until_ready(res2)
    ref2 = _reference_smape(yt2, yp2, m2)
    assert jnp.allclose(res2, ref2, rtol=1e-5, atol=1e-6), (res2, ref2)

    # Multi-tile streaming path: 2-way partial split + tail-row masking
    # (small tile_rows override keeps the test tiny while exercising the grid).
    B3, H3 = 240, 64
    yt3 = jax.random.normal(jax.random.PRNGKey(4), (B3, H3), dtype=jnp.float32)
    yp3 = jax.random.normal(jax.random.PRNGKey(5), (B3, H3), dtype=jnp.float32)
    m3 = (jax.random.uniform(jax.random.PRNGKey(6), (B3, H3)) > 0.5).astype(jnp.float32)
    res3 = nbeats_smape(yt3, yp3, m3, tile_rows=16)
    jax.block_until_ready(res3)
    ref3 = _reference_smape(yt3, yp3, m3)
    assert jnp.allclose(res3, ref3, rtol=1e-5, atol=1e-6), (res3, ref3)

    print("KERNEL_OK")
</pallas_src>

<mosaic_0001>
module attributes {stable_mosaic.version = 11 : i64} {
  func.func @_smape_single_kernel(%arg0: i32, %arg1: memref<16x128xf32, #tpu.memory_space<vmem>>, %arg2: memref<16x128xf32, #tpu.memory_space<vmem>>, %arg3: memref<16x128xf32, #tpu.memory_space<vmem>>, %arg4: memref<1x1xf32, #tpu.memory_space<smem>>) attributes {dimension_semantics = [#tpu.dimension_semantics<arbitrary>], iteration_bounds = array<i64: 1>, scalar_prefetch = 0 : i64, scratch_operands = 0 : i64, tpu.core_type = #tpu.core_type<tc>, window_params = [{pipeline_mode = #tpu.pipeline_mode<synchronous>, transform_indices = @transform_0, window_bounds = array<i64: 16, 128>}, {pipeline_mode = #tpu.pipeline_mode<synchronous>, transform_indices = @transform_1, window_bounds = array<i64: 16, 128>}, {pipeline_mode = #tpu.pipeline_mode<synchronous>, transform_indices = @transform_2, window_bounds = array<i64: 16, 128>}, {transform_indices = @transform_3, window_bounds = array<i64: 1, 1>}]} {
    %c0 = arith.constant 0 : index
    %c0_0 = arith.constant 0 : index
    %0 = vector.load %arg1[%c0, %c0_0] : memref<16x128xf32, #tpu.memory_space<vmem>>, vector<16x128xf32>
    %c0_1 = arith.constant 0 : index
    %c0_2 = arith.constant 0 : index
    %1 = vector.load %arg2[%c0_1, %c0_2] : memref<16x128xf32, #tpu.memory_space<vmem>>, vector<16x128xf32>
    %c0_3 = arith.constant 0 : index
    %c0_4 = arith.constant 0 : index
    %2 = vector.load %arg3[%c0_3, %c0_4] : memref<16x128xf32, #tpu.memory_space<vmem>>, vector<16x128xf32>
    %3 = arith.subf %0, %1 : vector<16x128xf32>
    %4 = math.absf %3 : vector<16x128xf32>
    %5 = math.absf %0 : vector<16x128xf32>
    %6 = math.absf %1 : vector<16x128xf32>
    %7 = arith.addf %5, %6 : vector<16x128xf32>
    %8 = arith.divf %4, %7 : vector<16x128xf32>
    %cst = arith.constant 0x7F800000 : f32
    %9 = vector.broadcast %cst : f32 to vector<16x128xf32>
    %10 = arith.cmpf olt, %8, %9 : vector<16x128xf32>
    %cst_5 = arith.constant 0.000000e+00 : f32
    %11 = vector.broadcast %cst_5 : f32 to vector<16x128xf32>
    %12 = arith.select %10, %8, %11 : vector<16x128xi1>, vector<16x128xf32>
    %13 = arith.mulf %12, %2 : vector<16x128xf32>
    %14 = vector.shape_cast %13 : vector<16x128xf32> to vector<1x16x128xf32>
    %cst_6 = arith.constant dense<0.000000e+00> : vector<1xf32>
    %15 = vector.multi_reduction <add>, %14, %cst_6 [1, 2] : vector<1x16x128xf32> to vector<1xf32>
    %16 = vector.shape_cast %15 : vector<1xf32> to vector<1x1x1xf32>
    %17 = vector.extract %16[0, 0, 0] : f32 from vector<1x1x1xf32>
    %cst_7 = arith.constant 0.09765625 : f32
    %18 = arith.mulf %17, %cst_7 : f32
    %c0_8 = arith.constant 0 : index
    %c0_9 = arith.constant 0 : index
    %19 = memref.load %arg4[%c0_8, %c0_9] : memref<1x1xf32, #tpu.memory_space<smem>>
    memref.store %18, %arg4[%c0_8, %c0_9] : memref<1x1xf32, #tpu.memory_space<smem>>
    return
  }
  func.func @transform_0(%arg0: i32) -> (i32, i32) {
    %c0_i32 = arith.constant 0 : i32
    %c0_i32_0 = arith.constant 0 : i32
    %c0_i32_1 = arith.constant 0 : i32
    return %c0_i32, %c0_i32_0 : i32, i32
  }
  func.func @transform_1(%arg0: i32) -> (i32, i32) {
    %c0_i32 = arith.constant 0 : i32
    %c0_i32_0 = arith.constant 0 : i32
    %c0_i32_1 = arith.constant 0 : i32
    return %c0_i32, %c0_i32_0 : i32, i32
  }
  func.func @transform_2(%arg0: i32) -> (i32, i32) {
    %c0_i32 = arith.constant 0 : i32
    %c0_i32_0 = arith.constant 0 : i32
    %c0_i32_1 = arith.constant 0 : i32
    return %c0_i32, %c0_i32_0 : i32, i32
  }
  func.func @transform_3(%arg0: i32) -> (i32, i32) {
    %c0_i32 = arith.constant 0 : i32
    %c0_i32_0 = arith.constant 0 : i32
    %c0_i32_1 = arith.constant 0 : i32
    return %c0_i32, %c0_i32_0 : i32, i32
  }
}

</mosaic_0001>

<llo_original>
// kernel: tpu_custom_call.1
$region0: #{tpu_custom_call.1}
  #allocation0 [shape = 'u32[]', space=smem, size = 0x4, offset = 0x4, fixed_abs, tag = 'smem constant byte address 0x4 - core index']
  #allocation1 [shape = 'u32[144,128]{1,0:T(1,128)}', space=vmem, size = 0x12000, scoped, tag = 'internal scratch']
  %s0 = inlined_call_operand.hbm [shape: f32[16,128], index: 0, kind: input, shape index: {}]
  %s1 = inlined_call_operand.hbm [shape: f32[16,128], index: 1, kind: input, shape index: {}]
  %s2 = inlined_call_operand.hbm [shape: f32[16,128], index: 2, kind: input, shape index: {}]
  %s3 = inlined_call_operand.hbm [shape: f32[1,1], index: 3, kind: output, shape index: {}]
  %s4 = sld [smem:[#allocation0]]
  $region34: #{tpu_custom_call.1} parent=0
    _
  %s6 = ssub.s32 1, %s4
  %s7 = scalar_select 0, %s6, %s4
  $region1: #{tpu_custom_call.1} parent=0
    #allocation2 [shape = 'u8[8192]{0}', space=vmem, size = 0x2000, scoped, tag = 'input window, operand 0, single buffered']
    #allocation3 [shape = 's32[1]{0}', space=sflag, size = 0x4, scoped, tag = 'scoped memory for tpu_custom_call.1']
    #allocation4 [shape = 's32[1]{0}', space=sflag, size = 0x4, scoped, tag = 'scoped memory for tpu_custom_call.1']
    #allocation5 [shape = 'u8[8192]{0}', space=vmem, size = 0x2000, scoped, tag = 'input window, operand 1, single buffered']
    #allocation6 [shape = 's32[1]{0}', space=sflag, size = 0x4, scoped, tag = 'scoped memory for tpu_custom_call.1']
    #allocation7 [shape = 'u8[8192]{0}', space=vmem, size = 0x2000, scoped, tag = 'input window, operand 2, single buffered']
    #allocation8 [shape = 'u8[512]{0}', space=smem, size = 0x200, scoped, tag = 'output window, operand 0, single buffered']
    %8 = vsyncpa [#allocation3], 0
    %9 = vsyncpa [#allocation6], 0
    %10 = vsyncpa [#allocation4], 0
    // Predicated region
    $region2: #{tpu_custom_call.1} parent=1 // pred_check
      _
    $region3: #{tpu_custom_call.1} parent=1 // pred_check_branch
      %12 = sbr.rel (0) target = $region5
    $region4: #{tpu_custom_call.1} parent=1 // pred_region
      %s14 = ssub.s32 256, 256
      %15 = vsyncadd [#allocation3], %s14
      %s16 = sshll.u32 [#allocation2], 4
      %s17 = int_to_ptr.vmem [resolvable:$true] %s16
      %22 = dma.hbm_to_vmem [thread:$0]  %s0, 256, %s17, [#allocation3], 128, 128, 8
    $region5: #{tpu_custom_call.1} parent=1 // pred_fallthru
      _
    // Predicated region
    $region6: #{tpu_custom_call.1} parent=1 // pred_check
      _
    $region7: #{tpu_custom_call.1} parent=1 // pred_check_branch
      %24 = sbr.rel (0) target = $region9
    $region8: #{tpu_custom_call.1} parent=1 // pred_region
      %s26 = ssub.s32 256, 256
      %27 = vsyncadd [#allocation6], %s26
      %s28 = sshll.u32 [#allocation5], 4
      %s29 = int_to_ptr.vmem [resolvable:$true] %s28
      %34 = dma.hbm_to_vmem [thread:$0]  %s1, 256, %s29, [#allocation6], 128, 128, 8
    $region9: #{tpu_custom_call.1} parent=1 // pred_fallthru
      _
    // Predicated region
    $region10: #{tpu_custom_call.1} parent=1 // pred_check
      _
    $region11: #{tpu_custom_call.1} parent=1 // pred_check_branch
      %36 = sbr.rel (0) target = $region13
    $region12: #{tpu_custom_call.1} parent=1 // pred_region
      %s38 = ssub.s32 256, 256
      %39 = vsyncadd [#allocation6], %s38
      %s40 = sshll.u32 [#allocation7], 4
      %s41 = int_to_ptr.vmem [resolvable:$true] %s40
      %46 = dma.hbm_to_vmem [thread:$0]  %s2, 256, %s41, [#allocation6], 128, 128, 8
    $region13: #{tpu_custom_call.1} parent=1 // pred_fallthru
      _
    // Predicated region
    $region14: #{tpu_custom_call.1} parent=1 // pred_check
      _
    $region15: #{tpu_custom_call.1} parent=1 // pred_check_branch
      %48 = sbr.rel (0) target = $region17
    $region16: #{tpu_custom_call.1} parent=1 // pred_region
      %49 = dma.done [#allocation3], 256
    $region17: #{tpu_custom_call.1} parent=1 // pred_fallthru
      _
    // Predicated region
    $region18: #{tpu_custom_call.1} parent=1 // pred_check
      _
    $region19: #{tpu_custom_call.1} parent=1 // pred_check_branch
      %51 = sbr.rel (0) target = $region21
    $region20: #{tpu_custom_call.1} parent=1 // pred_region
      %52 = dma.done [#allocation6], 256
    $region21: #{tpu_custom_call.1} parent=1 // pred_fallthru
      _
    // Predicated region
    $region22: #{tpu_custom_call.1} parent=1 // pred_check
      _
    $region23: #{tpu_custom_call.1} parent=1 // pred_check_branch
      %54 = sbr.rel (0) target = $region25
    $region24: #{tpu_custom_call.1} parent=1 // pred_region
      %55 = dma.done [#allocation6], 256
    $region25: #{tpu_custom_call.1} parent=1 // pred_fallthru
      _
    %v56 = vld [vmem:[#allocation2] sm:$0xff]
    %v57 = vld [vmem:[#allocation2 + $0x8] sm:$0xff]
    %v58 = vld [vmem:[#allocation5] sm:$0xff]
    %v59 = vld [vmem:[#allocation5 + $0x8] sm:$0xff]
    %v60 = vld [vmem:[#allocation7] sm:$0xff]
    %v61 = vld [vmem:[#allocation7 + $0x8] sm:$0xff]
    %v62 = vsub.f32 %v56, %v58
    %v63 = vsub.f32 %v57, %v59
    %v64 = vand.u32 2147483647, %v62
    %v65 = vand.u32 2147483647, %v63
    %v66 = vand.u32 2147483647, %v56
    %v67 = vand.u32 2147483647, %v57
    %v68 = vand.u32 2147483647, %v58
    %v69 = vand.u32 2147483647, %v59
    %v70 = vadd.f32 %v66, %v68
    %v71 = vadd.f32 %v67, %v69
    %v72 = vrcp.pop %v70
    %v73 = vmul.f32 %v64, %v72
    %v74 = vrcp.pop %v71
    %v75 = vmul.f32 %v65, %v74
    %vm76 = vcmp.lt.f32.partialorder %v73, inf
    %vm77 = vcmp.lt.f32.partialorder %v75, inf
    %v78 = vsel %vm76, %v73, 0.0
    %v79 = vsel %vm77, %v75, 0.0
    %v80 = vmul.f32 %v78, %v60
    %v81 = vmul.f32 %v79, %v61
    %v82 = vadd.f32 %v80, %v81
    %83 = vadd.xlane.f32.xlu0 %v82
    %v84 = vpop.xlane.xlu0 %83
    %v85 = vrot.slane %v84, 4
    %v86 = vadd.f32 %v84, %v85
    %v87 = vrot.slane %v86, 2
    %v88 = vadd.f32 %v86, %v87
    %v89 = vrot.slane %v88, 1
    %v90 = vadd.f32 %v88, %v89
    %s91 = vtos %v90
    %s92 = smul.f32 %s91, 0.09765625
    %s93 = scalar_lea.smem [#allocation8], 0
    %94 = sst [smem:[%s93]] %s92
    // Predicated region
    $region26: #{tpu_custom_call.1} parent=1 // pred_check
      _
    $region27: #{tpu_custom_call.1} parent=1 // pred_check_branch
      %96 = sbr.rel (0) target = $region29
    $region28: #{tpu_custom_call.1} parent=1 // pred_region
      %s98 = ssub.s32 16, 16
      %99 = vsyncadd [#allocation4], %s98
      %102 = dma.smem_to_hbm [#allocation8], 16, %s3, [#allocation4]
    $region29: #{tpu_custom_call.1} parent=1 // pred_fallthru
      _
    // Predicated region
    $region30: #{tpu_custom_call.1} parent=1 // pred_check
      _
    $region31: #{tpu_custom_call.1} parent=1 // pred_check_branch
      %104 = sbr.rel (0) target = $region33
    $region32: #{tpu_custom_call.1} parent=1 // pred_region
      %105 = dma.done [#allocation4], 16
    $region33: #{tpu_custom_call.1} parent=1 // pred_fallthru
      _
    %106 = sfence
    %107 = vsyncpa [#allocation3], 1
    %108 = vsyncpa [#allocation6], 1
    %109 = vsyncpa [#allocation4], 1

</llo_original>
